<compile_context>
chip_gen: v5e
topology: v5e:2x2
jax: 0.10.0
libtpu: 0.0.40
codegen_flags: <defaults>
</compile_context>

<pallas_src>
import functools

import jax
import jax.numpy as jnp
from jax.experimental import pallas as pl
from jax.experimental.pallas import tpu as pltpu

EPS = 1e-5
LANE = 128            # TPU lane width (last-dim vreg width)
BATCH_ALIGN = 16      # bf16 sublane pack (activations flow bf16 into the MXU)


def _round_up(n, m):
    return (n + m - 1) // m * m


# ----------------------------------------------------------------------------
# Kernel
# ----------------------------------------------------------------------------
def _bn_relu(h, gamma, beta, n_rows):
    """PyTorch training-mode BatchNorm1d (biased batch variance) + ReLU.

    One pass over h for the moments (sum + sum-of-squares on the XLU),
    var = E[h^2] - mean^2, gamma fused into the rsqrt scale and the mean
    folded into a (1,F) shift, so only ONE (B,F) multiply-add remains
    on the VPU: relu(h * scale + shift).
    """
    inv_n = 1.0 / n_rows
    mean = jnp.sum(h, axis=0, keepdims=True) * inv_n
    ex2 = jnp.sum(h * h, axis=0, keepdims=True) * inv_n
    var = ex2 - mean * mean
    scale = jax.lax.rsqrt(var + EPS) * gamma          # (1, F)
    shift = beta - mean * scale                       # (1, F)
    return jnp.maximum(h * scale + shift, 0.0)


def net_kernel(x_ref, w1_ref, w2_ref, w3_ref, vec_ref, o_ref, *, n_rows):
    # NOTE: the Linear biases of layer1/layer2 are intentionally not inputs:
    # training-mode BatchNorm subtracts the batch mean, which cancels any
    # constant per-feature bias exactly.
    n_rows_padded = x_ref.shape[0]
    h1_p = w1_ref.shape[1]
    h2_p = w2_ref.shape[1]
    out_dim = w3_ref.shape[1]

    # x arrives f32 and is cast to bf16 in-register (no pre-kernel cast op).
    x = x_ref[...].astype(w1_ref.dtype)

    # Packed (8, LANE) f32 vector block: rows = g1, be1, g2, be2, b3.
    vec = vec_ref[...]
    g1, be1 = vec[0:1, :h1_p], vec[1:2, :h1_p]
    g2, be2 = vec[2:3, :h2_p], vec[3:4, :h2_p]
    b3 = vec[4:5, :out_dim]

    # layer1: Linear (no bias) -> BatchNorm1d -> ReLU
    h1 = jnp.dot(x, w1_ref[...], preferred_element_type=jnp.float32)
    h1 = _bn_relu(h1, g1, be1, n_rows)
    if n_rows_padded != n_rows:
        # Zero-padded batch rows contribute exact zeros to BN1's moments
        # (divide is by n_rows), but BN1 maps them to -mean*scale+beta, so
        # mask them back to zero before they can pollute BN2's statistics.
        row_ids = jax.lax.broadcasted_iota(jnp.int32, h1.shape, 0)
        h1 = jnp.where(row_ids < n_rows, h1, 0.0)

    # layer2: Linear (no bias) -> BatchNorm1d -> ReLU
    h2 = jnp.dot(h1.astype(w2_ref.dtype), w2_ref[...],
                 preferred_element_type=jnp.float32)
    h2 = _bn_relu(h2, g2, be2, n_rows)

    # layer3: Linear (with bias) -> unpadded (B_p, out_dim) output
    o = jnp.dot(h2.astype(w3_ref.dtype), w3_ref[...],
                preferred_element_type=jnp.float32) + b3
    o_ref[...] = o.astype(o_ref.dtype)


# ----------------------------------------------------------------------------
# One-time parameter prep (hoisted out of the forward path)
# ----------------------------------------------------------------------------
def _pad2(a, rows, cols, value=0.0):
    return jnp.pad(a, ((0, rows - a.shape[0]), (0, cols - a.shape[1])),
                   constant_values=value)


def prepare_params(params, matmul_dtype=jnp.bfloat16):
    """Pad the hidden feature axes to the 128-lane width, cast the weights to
    the MXU dtype, and pack the five (1,F) vectors into one (8, LANE) block.
    Call once; reuse the result for every forward call."""
    in_dim, h1 = params["w1"].shape
    h2 = params["w2"].shape[1]
    out_dim = params["w3"].shape[1]
    h1_p = _round_up(h1, LANE)
    h2_p = _round_up(h2, LANE)
    vec_w = max(h1_p, h2_p, _round_up(out_dim, LANE))

    # Zero-padded weight rows/cols contribute nothing; gamma padded with 1 and
    # beta/bias with 0 so padded feature columns stay exactly 0 end-to-end.
    w1_p = _pad2(params["w1"], in_dim, h1_p).astype(matmul_dtype)   # K not padded
    w2_p = _pad2(params["w2"], h1_p, h2_p).astype(matmul_dtype)
    w3_p = _pad2(params["w3"], h2_p, out_dim).astype(matmul_dtype)  # N not padded

    vec = jnp.zeros((8, vec_w), jnp.float32)
    vec = vec.at[0, :h1].set(params["g1"][0])
    vec = vec.at[0, h1:h1_p].set(1.0)
    vec = vec.at[1, :h1].set(params["be1"][0])
    vec = vec.at[2, :h2].set(params["g2"][0])
    vec = vec.at[2, h2:h2_p].set(1.0)
    vec = vec.at[3, :h2].set(params["be2"][0])
    vec = vec.at[4, :out_dim].set(params["b3"][0])

    return dict(w1=w1_p, w2=w2_p, w3=w3_p, vec=vec)


# ----------------------------------------------------------------------------
# Forward (jitted)
# ----------------------------------------------------------------------------
def _full_spec(a):
    """Full-array VMEM block; block index bound per-arg (no late binding)."""
    idx = (0,) * a.ndim
    return pl.BlockSpec(a.shape, lambda: idx)


@jax.jit
def net_forward(x, prepped):
    """x: (B, in_dim) f32.  prepped: output of prepare_params (cached)."""
    B, in_dim = x.shape
    w1, w2, w3, vec = prepped["w1"], prepped["w2"], prepped["w3"], prepped["vec"]
    h1_p, h2_p, out_dim = w1.shape[1], w2.shape[1], w3.shape[1]

    B_p = _round_up(B, BATCH_ALIGN)
    x_p = x if B_p == B else jnp.pad(x, ((0, B_p - B), (0, 0)))

    args = (x_p, w1, w2, w3, vec)
    kernel = functools.partial(net_kernel, n_rows=B)

    flops = 2 * B_p * (in_dim * h1_p + h1_p * h2_p + h2_p * out_dim)
    transcendentals = h1_p + h2_p                      # one rsqrt per BN column
    bytes_accessed = (sum(int(a.size) * a.dtype.itemsize for a in args)
                      + B_p * out_dim * 4)

    out = pl.pallas_call(
        kernel,
        out_shape=jax.ShapeDtypeStruct((B_p, out_dim), jnp.float32),
        grid=(),
        in_specs=[_full_spec(a) for a in args],
        out_specs=pl.BlockSpec((B_p, out_dim), lambda: (0, 0)),
        cost_estimate=pl.CostEstimate(flops=flops,
                                      transcendentals=transcendentals,
                                      bytes_accessed=bytes_accessed),
    )(*args)

    return out if B_p == B else out[:B]


# ----------------------------------------------------------------------------
# Params / references
# ----------------------------------------------------------------------------
def init_params(key, in_dim, n_hidden_1, n_hidden_2, out_dim):
    """PyTorch-like init.  Linear weights stored transposed as
    (in_features, out_features); biases / BN params stored as (1, F)."""
    ks = jax.random.split(key, 6)

    def linear(kw, kb, fan_in, fan_out):
        bound = 1.0 / jnp.sqrt(fan_in)
        w = jax.random.uniform(kw, (fan_in, fan_out), jnp.float32, -bound, bound)
        b = jax.random.uniform(kb, (1, fan_out), jnp.float32, -bound, bound)
        return w, b

    w1, b1 = linear(ks[0], ks[1], in_dim, n_hidden_1)
    w2, b2 = linear(ks[2], ks[3], n_hidden_1, n_hidden_2)
    w3, b3 = linear(ks[4], ks[5], n_hidden_2, out_dim)

    return dict(
        w1=w1, b1=b1,
        g1=jnp.ones((1, n_hidden_1), jnp.float32),
        be1=jnp.zeros((1, n_hidden_1), jnp.float32),
        w2=w2, b2=b2,
        g2=jnp.ones((1, n_hidden_2), jnp.float32),
        be2=jnp.zeros((1, n_hidden_2), jnp.float32),
        w3=w3, b3=b3,
    )


def net_reference_f32(x, p):
    """Exact PyTorch training-mode forward in f32 (includes b1/b2)."""
    def bn(h, g, b):
        mean = jnp.mean(h, axis=0, keepdims=True)
        var = jnp.mean((h - mean) ** 2, axis=0, keepdims=True)
        return (h - mean) * jax.lax.rsqrt(var + EPS) * g + b
    h = x @ p["w1"] + p["b1"]
    h = jnp.maximum(bn(h, p["g1"], p["be1"]), 0.0)
    h = h @ p["w2"] + p["b2"]
    h = jnp.maximum(bn(h, p["g2"], p["be2"]), 0.0)
    return h @ p["w3"] + p["b3"]


def net_reference_mirrored(x, p):
    """Mirrors the kernel's numerics exactly: bf16 matmul inputs, f32
    accumulation, one-pass BN stats, scale/shift form, b1/b2 dropped."""
    dt = jnp.bfloat16

    def bn_relu(h, g, b):
        mean = jnp.mean(h, axis=0, keepdims=True)
        var = jnp.mean(h * h, axis=0, keepdims=True) - mean * mean
        scale = jax.lax.rsqrt(var + EPS) * g
        shift = b - mean * scale
        return jnp.maximum(h * scale + shift, 0.0)

    h = jnp.dot(x.astype(dt), p["w1"].astype(dt),
                preferred_element_type=jnp.float32)
    h = bn_relu(h, p["g1"], p["be1"])
    h = jnp.dot(h.astype(dt), p["w2"].astype(dt),
                preferred_element_type=jnp.float32)
    h = bn_relu(h, p["g2"], p["be2"])
    return jnp.dot(h.astype(dt), p["w3"].astype(dt),
                   preferred_element_type=jnp.float32) + p["b3"]


def _check(out, x, params, tag):
    ref_mirror = net_reference_mirrored(x, params)
    assert jnp.allclose(out, ref_mirror, atol=2e-3, rtol=2e-3), \
        f"[{tag}] mismatch vs mirrored (bf16-matmul) reference"
    ref_f32 = net_reference_f32(x, params)
    assert jnp.allclose(out, ref_f32, atol=6e-2, rtol=6e-2), \
        f"[{tag}] mismatch vs f32 PyTorch-semantics reference"


# ----------------------------------------------------------------------------
if __name__ == "__main__":
    # 256 batch rows fill the MXU row dimension on v6e/v7x (2x the v5e MXU);
    # hidden widths (64/32) are lane-padded to 128 once at prep time, while
    # the layer-1 contraction (32) and the output (16) stay unpadded.
    B, in_dim, n_hidden_1, n_hidden_2, out_dim = 256, 32, 64, 32, 16

    key = jax.random.PRNGKey(0)
    kx, kp = jax.random.split(key)
    x = jax.random.normal(kx, (B, in_dim), jnp.float32)
    params = init_params(kp, in_dim, n_hidden_1, n_hidden_2, out_dim)

    # One-time, cached parameter prep (hoisted out of the forward path).
    prepped = prepare_params(params)
    jax.block_until_ready(prepped)

    out = net_forward(x, prepped)
    jax.block_until_ready(out)
    assert out.shape == (B, out_dim)
    _check(out, x, params, "B=256")

    # Also exercise the padded-batch (row-mask) path with a non-aligned batch.
    B2 = 100
    x2 = jax.random.normal(jax.random.PRNGKey(1), (B2, in_dim), jnp.float32)
    out2 = net_forward(x2, prepped)
    jax.block_until_ready(out2)
    assert out2.shape == (B2, out_dim)
    _check(out2, x2, params, "B=100")

    print("KERNEL_OK")
</pallas_src>

<mosaic_0001>
module attributes {stable_mosaic.version = 11 : i64} {
  func.func @net_kernel(%arg0: memref<256x32xf32, #tpu.memory_space<vmem>>, %arg1: memref<32x128xbf16, #tpu.memory_space<vmem>>, %arg2: memref<128x128xbf16, #tpu.memory_space<vmem>>, %arg3: memref<128x16xbf16, #tpu.memory_space<vmem>>, %arg4: memref<8x128xf32, #tpu.memory_space<vmem>>, %arg5: memref<256x16xf32, #tpu.memory_space<vmem>>) attributes {dimension_semantics = [], scalar_prefetch = 0 : i64, scratch_operands = 0 : i64, tpu.core_type = #tpu.core_type<tc>} {
    %c0 = arith.constant 0 : index
    %c0_0 = arith.constant 0 : index
    %0 = vector.load %arg0[%c0, %c0_0] : memref<256x32xf32, #tpu.memory_space<vmem>>, vector<256x32xf32>
    %1 = arith.truncf %0 : vector<256x32xf32> to vector<256x32xbf16>
    %c0_1 = arith.constant 0 : index
    %c0_2 = arith.constant 0 : index
    %2 = vector.load %arg4[%c0_1, %c0_2] : memref<8x128xf32, #tpu.memory_space<vmem>>, vector<8x128xf32>
    %3 = vector.extract_strided_slice %2 {offsets = [0, 0], sizes = [1, 128], strides = [1, 1]} : vector<8x128xf32> to vector<1x128xf32>
    %4 = vector.extract_strided_slice %2 {offsets = [1, 0], sizes = [1, 128], strides = [1, 1]} : vector<8x128xf32> to vector<1x128xf32>
    %5 = vector.extract_strided_slice %2 {offsets = [2, 0], sizes = [1, 128], strides = [1, 1]} : vector<8x128xf32> to vector<1x128xf32>
    %6 = vector.extract_strided_slice %2 {offsets = [3, 0], sizes = [1, 128], strides = [1, 1]} : vector<8x128xf32> to vector<1x128xf32>
    %7 = vector.extract_strided_slice %2 {offsets = [4, 0], sizes = [1, 16], strides = [1, 1]} : vector<8x128xf32> to vector<1x16xf32>
    %c0_3 = arith.constant 0 : index
    %c0_4 = arith.constant 0 : index
    %8 = vector.load %arg1[%c0_3, %c0_4] : memref<32x128xbf16, #tpu.memory_space<vmem>>, vector<32x128xbf16>
    %cst = arith.constant dense<0.000000e+00> : vector<256x128xf32>
    %9 = tpu.matmul %1, %8, %cst {dimension_numbers = #tpu.dot_dimension_numbers<[1], [0], [0], [1], [0, 0, 1, 1], [], []>} : vector<256x32xbf16>, vector<32x128xbf16>, vector<256x128xf32> -> vector<256x128xf32>
    %cst_5 = arith.constant dense<0.000000e+00> : vector<128xf32>
    %10 = vector.multi_reduction <add>, %9, %cst_5 [0] : vector<256x128xf32> to vector<128xf32>
    %11 = vector.shape_cast %10 : vector<128xf32> to vector<1x128xf32>
    %cst_6 = arith.constant 3.906250e-03 : f32
    %12 = vector.broadcast %cst_6 : f32 to vector<1x128xf32>
    %13 = arith.mulf %11, %12 : vector<1x128xf32>
    %14 = arith.mulf %9, %9 : vector<256x128xf32>
    %cst_7 = arith.constant dense<0.000000e+00> : vector<128xf32>
    %15 = vector.multi_reduction <add>, %14, %cst_7 [0] : vector<256x128xf32> to vector<128xf32>
    %16 = vector.shape_cast %15 : vector<128xf32> to vector<1x128xf32>
    %cst_8 = arith.constant 3.906250e-03 : f32
    %17 = vector.broadcast %cst_8 : f32 to vector<1x128xf32>
    %18 = arith.mulf %16, %17 : vector<1x128xf32>
    %19 = arith.mulf %13, %13 : vector<1x128xf32>
    %20 = arith.subf %18, %19 : vector<1x128xf32>
    %cst_9 = arith.constant 9.99999974E-6 : f32
    %21 = vector.broadcast %cst_9 : f32 to vector<1x128xf32>
    %22 = arith.addf %20, %21 : vector<1x128xf32>
    %23 = math.rsqrt %22 : vector<1x128xf32>
    %24 = arith.mulf %23, %3 : vector<1x128xf32>
    %25 = arith.mulf %13, %24 : vector<1x128xf32>
    %26 = arith.subf %4, %25 : vector<1x128xf32>
    %27 = vector.broadcast %24 : vector<1x128xf32> to vector<256x128xf32>
    %28 = arith.mulf %9, %27 : vector<256x128xf32>
    %29 = vector.broadcast %26 : vector<1x128xf32> to vector<256x128xf32>
    %30 = arith.addf %28, %29 : vector<256x128xf32>
    %cst_10 = arith.constant 0.000000e+00 : f32
    %31 = vector.broadcast %cst_10 : f32 to vector<256x128xf32>
    %32 = arith.maximumf %30, %31 : vector<256x128xf32>
    %33 = arith.truncf %32 : vector<256x128xf32> to vector<256x128xbf16>
    %c0_11 = arith.constant 0 : index
    %c0_12 = arith.constant 0 : index
    %34 = vector.load %arg2[%c0_11, %c0_12] : memref<128x128xbf16, #tpu.memory_space<vmem>>, vector<128x128xbf16>
    %cst_13 = arith.constant dense<0.000000e+00> : vector<256x128xf32>
    %35 = tpu.matmul %33, %34, %cst_13 {dimension_numbers = #tpu.dot_dimension_numbers<[1], [0], [0], [1], [0, 0, 1, 1], [], []>} : vector<256x128xbf16>, vector<128x128xbf16>, vector<256x128xf32> -> vector<256x128xf32>
    %cst_14 = arith.constant dense<0.000000e+00> : vector<128xf32>
    %36 = vector.multi_reduction <add>, %35, %cst_14 [0] : vector<256x128xf32> to vector<128xf32>
    %37 = vector.shape_cast %36 : vector<128xf32> to vector<1x128xf32>
    %cst_15 = arith.constant 3.906250e-03 : f32
    %38 = vector.broadcast %cst_15 : f32 to vector<1x128xf32>
    %39 = arith.mulf %37, %38 : vector<1x128xf32>
    %40 = arith.mulf %35, %35 : vector<256x128xf32>
    %cst_16 = arith.constant dense<0.000000e+00> : vector<128xf32>
    %41 = vector.multi_reduction <add>, %40, %cst_16 [0] : vector<256x128xf32> to vector<128xf32>
    %42 = vector.shape_cast %41 : vector<128xf32> to vector<1x128xf32>
    %cst_17 = arith.constant 3.906250e-03 : f32
    %43 = vector.broadcast %cst_17 : f32 to vector<1x128xf32>
    %44 = arith.mulf %42, %43 : vector<1x128xf32>
    %45 = arith.mulf %39, %39 : vector<1x128xf32>
    %46 = arith.subf %44, %45 : vector<1x128xf32>
    %cst_18 = arith.constant 9.99999974E-6 : f32
    %47 = vector.broadcast %cst_18 : f32 to vector<1x128xf32>
    %48 = arith.addf %46, %47 : vector<1x128xf32>
    %49 = math.rsqrt %48 : vector<1x128xf32>
    %50 = arith.mulf %49, %5 : vector<1x128xf32>
    %51 = arith.mulf %39, %50 : vector<1x128xf32>
    %52 = arith.subf %6, %51 : vector<1x128xf32>
    %53 = vector.broadcast %50 : vector<1x128xf32> to vector<256x128xf32>
    %54 = arith.mulf %35, %53 : vector<256x128xf32>
    %55 = vector.broadcast %52 : vector<1x128xf32> to vector<256x128xf32>
    %56 = arith.addf %54, %55 : vector<256x128xf32>
    %cst_19 = arith.constant 0.000000e+00 : f32
    %57 = vector.broadcast %cst_19 : f32 to vector<256x128xf32>
    %58 = arith.maximumf %56, %57 : vector<256x128xf32>
    %59 = arith.truncf %58 : vector<256x128xf32> to vector<256x128xbf16>
    %c0_20 = arith.constant 0 : index
    %c0_21 = arith.constant 0 : index
    %60 = vector.load %arg3[%c0_20, %c0_21] : memref<128x16xbf16, #tpu.memory_space<vmem>>, vector<128x16xbf16>
    %cst_22 = arith.constant dense<0.000000e+00> : vector<256x16xf32>
    %61 = tpu.matmul %59, %60, %cst_22 {dimension_numbers = #tpu.dot_dimension_numbers<[1], [0], [0], [1], [0, 0, 1, 1], [], []>} : vector<256x128xbf16>, vector<128x16xbf16>, vector<256x16xf32> -> vector<256x16xf32>
    %62 = vector.broadcast %7 : vector<1x16xf32> to vector<256x16xf32>
    %63 = arith.addf %61, %62 : vector<256x16xf32>
    %c0_23 = arith.constant 0 : index
    %c0_24 = arith.constant 0 : index
    %64 = vector.load %arg5[%c0_23, %c0_24] : memref<256x16xf32, #tpu.memory_space<vmem>>, vector<256x16xf32>
    tpu.vector_store %arg5[%c0_23, %c0_24], %63 {strides = array<i32>} : memref<256x16xf32, #tpu.memory_space<vmem>>, vector<256x16xf32>,
    return
  }
}

</mosaic_0001>

<llo_original>
// kernel: net_forward.1
$region0: #{net_forward.1}
  #allocation0 [shape = 'u32[]', space=smem, size = 0x4, offset = 0x4, fixed_abs, tag = 'smem constant byte address 0x4 - core index']
  #allocation1 [shape = 'u32[72,128]{1,0:T(1,128)}', space=vmem, size = 0x9000, scoped, tag = 'internal scratch']
  %s0 = inlined_call_operand.vmem [shape: f32[256,32], index: 0, kind: input, shape index: {}]
  %s1 = inlined_call_operand.vmem [shape: bf16[32,128], index: 1, kind: input, shape index: {}]
  %s2 = inlined_call_operand.vmem [shape: bf16[128,128], index: 2, kind: input, shape index: {}]
  %s3 = inlined_call_operand.vmem [shape: bf16[128,16], index: 3, kind: input, shape index: {}]
  %s4 = inlined_call_operand.vmem [shape: f32[8,128], index: 4, kind: input, shape index: {}]
  %s5 = inlined_call_operand.vmem [shape: f32[256,16], index: 5, kind: output, shape index: {}]
  %s6 = sld [smem:[#allocation0]]
  $region30: #{net_forward.1} parent=0
    _
  %s8 = ssub.s32 1, %s6
  %s9 = scalar_select 0, %s8, %s6
  // Predicated region
  $region2: #{net_forward.1} parent=0 // pred_check
    _
  $region3: #{net_forward.1} parent=0 // pred_check_branch
    %11 = sbr.rel (0) target = $region5
  $region4: #{net_forward.1} parent=0 // pred_region
    _
  $region5: #{net_forward.1} parent=0 // pred_fallthru
    _
  // Predicated region
  $region6: #{net_forward.1} parent=0 // pred_check
    _
  $region7: #{net_forward.1} parent=0 // pred_check_branch
    %13 = sbr.rel (0) target = $region9
  $region8: #{net_forward.1} parent=0 // pred_region
    _
  $region9: #{net_forward.1} parent=0 // pred_fallthru
    _
  // Predicated region
  $region10: #{net_forward.1} parent=0 // pred_check
    _
  $region11: #{net_forward.1} parent=0 // pred_check_branch
    %15 = sbr.rel (0) target = $region13
  $region12: #{net_forward.1} parent=0 // pred_region
    _
  $region13: #{net_forward.1} parent=0 // pred_fallthru
    _
  // Predicated region
  $region14: #{net_forward.1} parent=0 // pred_check
    _
  $region15: #{net_forward.1} parent=0 // pred_check_branch
    %17 = sbr.rel (0) target = $region17
  $region16: #{net_forward.1} parent=0 // pred_region
    _
  $region17: #{net_forward.1} parent=0 // pred_fallthru
    _
  // Predicated region
  $region18: #{net_forward.1} parent=0 // pred_check
    _
  $region19: #{net_forward.1} parent=0 // pred_check_branch
    %19 = sbr.rel (0) target = $region21
  $region20: #{net_forward.1} parent=0 // pred_region
    _
  $region21: #{net_forward.1} parent=0 // pred_fallthru
    _
  %v21 = vld [vmem:[%s0] sm:$0xff]
  %v22 = vld [vmem:[%s0 + $0x8] sm:$0xff]
  %v23 = vld [vmem:[%s0 + $0x10] sm:$0xff]
  %v24 = vld [vmem:[%s0 + $0x18] sm:$0xff]
  %v25 = vld [vmem:[%s0 + $0x20] sm:$0xff]
  %v26 = vld [vmem:[%s0 + $0x28] sm:$0xff]
  %v27 = vld [vmem:[%s0 + $0x30] sm:$0xff]
  %v28 = vld [vmem:[%s0 + $0x38] sm:$0xff]
  %v29 = vld [vmem:[%s0 + $0x40] sm:$0xff]
  %v30 = vld [vmem:[%s0 + $0x48] sm:$0xff]
  %v31 = vld [vmem:[%s0 + $0x50] sm:$0xff]
  %v32 = vld [vmem:[%s0 + $0x58] sm:$0xff]
  %v33 = vld [vmem:[%s0 + $0x60] sm:$0xff]
  %v34 = vld [vmem:[%s0 + $0x68] sm:$0xff]
  %v35 = vld [vmem:[%s0 + $0x70] sm:$0xff]
  %v36 = vld [vmem:[%s0 + $0x78] sm:$0xff]
  %v37 = vld [vmem:[%s0 + $0x80] sm:$0xff]
  %v38 = vld [vmem:[%s0 + $0x88] sm:$0xff]
  %v39 = vld [vmem:[%s0 + $0x90] sm:$0xff]
  %v40 = vld [vmem:[%s0 + $0x98] sm:$0xff]
  %v41 = vld [vmem:[%s0 + $0xa0] sm:$0xff]
  %v42 = vld [vmem:[%s0 + $0xa8] sm:$0xff]
  %v43 = vld [vmem:[%s0 + $0xb0] sm:$0xff]
  %v44 = vld [vmem:[%s0 + $0xb8] sm:$0xff]
  %v45 = vld [vmem:[%s0 + $0xc0] sm:$0xff]
  %v46 = vld [vmem:[%s0 + $0xc8] sm:$0xff]
  %v47 = vld [vmem:[%s0 + $0xd0] sm:$0xff]
  %v48 = vld [vmem:[%s0 + $0xd8] sm:$0xff]
  %v49 = vld [vmem:[%s0 + $0xe0] sm:$0xff]
  %v50 = vld [vmem:[%s0 + $0xe8] sm:$0xff]
  %v51 = vld [vmem:[%s0 + $0xf0] sm:$0xff]
  %v52 = vld [vmem:[%s0 + $0xf8] sm:$0xff]
  %v53 = vpack.c.bf16 %v22, %v21
  %v54 = vpack.c.bf16 %v24, %v23
  %v55 = vpack.c.bf16 %v26, %v25
  %v56 = vpack.c.bf16 %v28, %v27
  %v57 = vpack.c.bf16 %v30, %v29
  %v58 = vpack.c.bf16 %v32, %v31
  %v59 = vpack.c.bf16 %v34, %v33
  %v60 = vpack.c.bf16 %v36, %v35
  %v61 = vpack.c.bf16 %v38, %v37
  %v62 = vpack.c.bf16 %v40, %v39
  %v63 = vpack.c.bf16 %v42, %v41
  %v64 = vpack.c.bf16 %v44, %v43
  %v65 = vpack.c.bf16 %v46, %v45
  %v66 = vpack.c.bf16 %v48, %v47
  %v67 = vpack.c.bf16 %v50, %v49
  %v68 = vpack.c.bf16 %v52, %v51
  %v69 = vld [vmem:[%s4] sm:$0xff]
  %v70 = vld [vmem:[%s1] sm:$0xf]
  %v71 = vld [vmem:[%s1 + $0x4] sm:$0xf]
  %v72 = vld [vmem:[%s1 + $0x8] sm:$0xf]
  %v73 = vld [vmem:[%s1 + $0xc] sm:$0xf]
  %v78 = vunpack.c.l.b16 %v70
  %v79 = vunpack.c.l.b16 %v71
  %v80 = vunpack.c.l.b16 %v72
  %v81 = vunpack.c.l.b16 %v73
  %v82 = vpack.c.b16 %v79, %v78
  %v83 = vpack.c.b16 %v81, %v80
  %vm86 = vcmask 261120
  %v88 = vsel %vm86, %v53, 0
  %v91 = vsel %vm86, %v54, 0
  %v94 = vsel %vm86, %v55, 0
  %v97 = vsel %vm86, %v56, 0
  %v100 = vsel %vm86, %v57, 0
  %v103 = vsel %vm86, %v58, 0
  %v106 = vsel %vm86, %v59, 0
  %v109 = vsel %vm86, %v60, 0
  %v112 = vsel %vm86, %v61, 0
  %v115 = vsel %vm86, %v62, 0
  %v118 = vsel %vm86, %v63, 0
  %v121 = vsel %vm86, %v64, 0
  %v124 = vsel %vm86, %v65, 0
  %v127 = vsel %vm86, %v66, 0
  %v130 = vsel %vm86, %v67, 0
  %v133 = vsel %vm86, %v68, 0
  %135 = vmatpush.bf16.msra.mxu0 0
  %136 = vmatpush.bf16.msra.mxu0 0
  %137 = vmatpush.bf16.msra.mxu0 0
  %138 = vmatpush.bf16.msra.mxu0 0
  %139 = vmatpush.bf16.msra.mxu0 0
  %140 = vmatpush.bf16.msra.mxu0 0
  %141 = vmatpush.bf16.msra.mxu0 %v83
  %142 = vmatpush.bf16.msra.mxu0 %v82
  %143 = vmatmul.bf16.gmra.mxu0 %v88
  %v144 = vpop.f32.mrf.mxu0
  %v145 = vadd.f32 0.0, %v144
  %v146 = vpop.f32.mrf.mxu0
  %v147 = vadd.f32 0.0, %v146
  %148 = vmatmul.bf16.gmra.mxu0 %v91
  %v149 = vpop.f32.mrf.mxu0
  %v150 = vadd.f32 0.0, %v149
  %v151 = vpop.f32.mrf.mxu0
  %v152 = vadd.f32 0.0, %v151
  %153 = vmatmul.bf16.gmra.mxu0 %v94
  %v154 = vpop.f32.mrf.mxu0
  %v155 = vadd.f32 0.0, %v154
  %v156 = vpop.f32.mrf.mxu0
  %v157 = vadd.f32 0.0, %v156
  %158 = vmatmul.bf16.gmra.mxu0 %v97
  %v159 = vpop.f32.mrf.mxu0
  %v160 = vadd.f32 0.0, %v159
  %v161 = vpop.f32.mrf.mxu0
  %v162 = vadd.f32 0.0, %v161
  %163 = vmatmul.bf16.gmra.mxu0 %v100
  %v164 = vpop.f32.mrf.mxu0
  %v165 = vadd.f32 0.0, %v164
  %v166 = vpop.f32.mrf.mxu0
  %v167 = vadd.f32 0.0, %v166
  %168 = vmatmul.bf16.gmra.mxu0 %v103
  %v169 = vpop.f32.mrf.mxu0
  %v170 = vadd.f32 0.0, %v169
  %v171 = vpop.f32.mrf.mxu0
  %v172 = vadd.f32 0.0, %v171
  %173 = vmatmul.bf16.gmra.mxu0 %v106
  %v174 = vpop.f32.mrf.mxu0
  %v175 = vadd.f32 0.0, %v174
  %v176 = vpop.f32.mrf.mxu0
  %v177 = vadd.f32 0.0, %v176
  %178 = vmatmul.bf16.gmra.mxu0 %v109
  %v179 = vpop.f32.mrf.mxu0
  %v180 = vadd.f32 0.0, %v179
  %v181 = vpop.f32.mrf.mxu0
  %v182 = vadd.f32 0.0, %v181
  %183 = vmatmul.bf16.gmra.mxu0 %v112
  %v184 = vpop.f32.mrf.mxu0
  %v185 = vadd.f32 0.0, %v184
  %v186 = vpop.f32.mrf.mxu0
  %v187 = vadd.f32 0.0, %v186
  %188 = vmatmul.bf16.gmra.mxu0 %v115
  %v189 = vpop.f32.mrf.mxu0
  %v190 = vadd.f32 0.0, %v189
  %v191 = vpop.f32.mrf.mxu0
  %v192 = vadd.f32 0.0, %v191
  %193 = vmatmul.bf16.gmra.mxu0 %v118
  %v194 = vpop.f32.mrf.mxu0
  %v195 = vadd.f32 0.0, %v194
  %v196 = vpop.f32.mrf.mxu0
  %v197 = vadd.f32 0.0, %v196
  %198 = vmatmul.bf16.gmra.mxu0 %v121
  %v199 = vpop.f32.mrf.mxu0
  %v200 = vadd.f32 0.0, %v199
  %v201 = vpop.f32.mrf.mxu0
  %v202 = vadd.f32 0.0, %v201
  %203 = vmatmul.bf16.gmra.mxu0 %v124
  %v204 = vpop.f32.mrf.mxu0
  %v205 = vadd.f32 0.0, %v204
  %v206 = vpop.f32.mrf.mxu0
  %v207 = vadd.f32 0.0, %v206
  %208 = vmatmul.bf16.gmra.mxu0 %v127
  %v209 = vpop.f32.mrf.mxu0
  %v210 = vadd.f32 0.0, %v209
  %v211 = vpop.f32.mrf.mxu0
  %v212 = vadd.f32 0.0, %v211
  %213 = vmatmul.bf16.gmra.mxu0 %v130
  %v214 = vpop.f32.mrf.mxu0
  %v215 = vadd.f32 0.0, %v214
  %v216 = vpop.f32.mrf.mxu0
  %v217 = vadd.f32 0.0, %v216
  %218 = vmatmul.bf16.gmra.mxu0 %v133
  %v219 = vpop.f32.mrf.mxu0
  %v220 = vadd.f32 0.0, %v219
  %v221 = vpop.f32.mrf.mxu0
  %v222 = vadd.f32 0.0, %v221
  %223 = vdwg.mxu0
  %v224 = vadd.f32 %v145, %v147
  %v225 = vadd.f32 %v224, %v150
  %v226 = vadd.f32 %v225, %v152
  %v227 = vadd.f32 %v226, %v155
  %v228 = vadd.f32 %v227, %v157
  %v229 = vadd.f32 %v228, %v160
  %v230 = vadd.f32 %v229, %v162
  %v231 = vadd.f32 %v230, %v165
  %v232 = vadd.f32 %v231, %v167
  %v233 = vadd.f32 %v232, %v170
  %v234 = vadd.f32 %v233, %v172
  %v235 = vadd.f32 %v234, %v175
  %v236 = vadd.f32 %v235, %v177
  %v237 = vadd.f32 %v236, %v180
  %v238 = vadd.f32 %v237, %v182
  %v239 = vadd.f32 %v238, %v185
  %v240 = vadd.f32 %v239, %v187
  %v241 = vadd.f32 %v240, %v190
  %v242 = vadd.f32 %v241, %v192
  %v243 = vadd.f32 %v242, %v195
  %v244 = vadd.f32 %v243, %v197
  %v245 = vadd.f32 %v244, %v200
  %v246 = vadd.f32 %v245, %v202
  %v247 = vadd.f32 %v246, %v205
  %v248 = vadd.f32 %v247, %v207
  %v249 = vadd.f32 %v248, %v210
  %v250 = vadd.f32 %v249, %v212
  %v251 = vadd.f32 %v250, %v215
  %v252 = vadd.f32 %v251, %v217
  %v253 = vadd.f32 %v252, %v220
  %v254 = vadd.f32 %v253, %v222
  %v255 = vrot.slane %v254, 4
  %v256 = vadd.f32 %v254, %v255
  %v257 = vrot.slane %v256, 2
  %v258 = vadd.f32 %v256, %v257
  %v259 = vrot.slane %v258, 1
  %v260 = vadd.f32 %v258, %v259
  %v261 = vmul.f32 %v260, 0.00390625
  %v262 = vmul.f32 %v145, %v145
  %v263 = vmul.f32 %v147, %v147
  %v264 = vmul.f32 %v150, %v150
  %v265 = vmul.f32 %v152, %v152
  %v266 = vmul.f32 %v155, %v155
  %v267 = vmul.f32 %v157, %v157
  %v268 = vmul.f32 %v160, %v160
  %v269 = vmul.f32 %v162, %v162
  %v270 = vmul.f32 %v165, %v165
  %v271 = vmul.f32 %v167, %v167
  %v272 = vmul.f32 %v170, %v170
  %v273 = vmul.f32 %v172, %v172
  %v274 = vmul.f32 %v175, %v175
  %v275 = vmul.f32 %v177, %v177
  %v276 = vmul.f32 %v180, %v180
  %v277 = vmul.f32 %v182, %v182
  %v278 = vmul.f32 %v185, %v185
  %v279 = vmul.f32 %v187, %v187
  %v280 = vmul.f32 %v190, %v190
  %v281 = vmul.f32 %v192, %v192
  %v282 = vmul.f32 %v195, %v195
  %v283 = vmul.f32 %v197, %v197
  %v284 = vmul.f32 %v200, %v200
  %v285 = vmul.f32 %v202, %v202
  %v286 = vmul.f32 %v205, %v205
  %v287 = vmul.f32 %v207, %v207
  %v288 = vmul.f32 %v210, %v210
  %v289 = vmul.f32 %v212, %v212
  %v290 = vmul.f32 %v215, %v215
  %v291 = vmul.f32 %v217, %v217
  %v292 = vmul.f32 %v220, %v220
  %v293 = vmul.f32 %v222, %v222
  %v294 = vadd.f32 %v262, %v263
  %v295 = vadd.f32 %v294, %v264
  %v296 = vadd.f32 %v295, %v265
  %v297 = vadd.f32 %v296, %v266
  %v298 = vadd.f32 %v297, %v267
  %v299 = vadd.f32 %v298, %v268
  %v300 = vadd.f32 %v299, %v269
  %v301 = vadd.f32 %v300, %v270
  %v302 = vadd.f32 %v301, %v271
  %v303 = vadd.f32 %v302, %v272
  %v304 = vadd.f32 %v303, %v273
  %v305 = vadd.f32 %v304, %v274
  %v306 = vadd.f32 %v305, %v275
  %v307 = vadd.f32 %v306, %v276
  %v308 = vadd.f32 %v307, %v277
  %v309 = vadd.f32 %v308, %v278
  %v310 = vadd.f32 %v309, %v279
  %v311 = vadd.f32 %v310, %v280
  %v312 = vadd.f32 %v311, %v281
  %v313 = vadd.f32 %v312, %v282
  %v314 = vadd.f32 %v313, %v283
  %v315 = vadd.f32 %v314, %v284
  %v316 = vadd.f32 %v315, %v285
  %v317 = vadd.f32 %v316, %v286
  %v318 = vadd.f32 %v317, %v287
  %v319 = vadd.f32 %v318, %v288
  %v320 = vadd.f32 %v319, %v289
  %v321 = vadd.f32 %v320, %v290
  %v322 = vadd.f32 %v321, %v291
  %v323 = vadd.f32 %v322, %v292
  %v324 = vadd.f32 %v323, %v293
  %v325 = vrot.slane %v324, 4
  %v326 = vadd.f32 %v324, %v325
  %v327 = vrot.slane %v326, 2
  %v328 = vadd.f32 %v326, %v327
  %v329 = vrot.slane %v328, 1
  %v330 = vadd.f32 %v328, %v329
  %v331 = vmul.f32 %v330, 0.00390625
  %v332 = vmul.f32 %v261, %v261
  %v333 = vsub.f32 %v331, %v332
  %v334 = vadd.f32 %v333, 1e-05
  %v335 = vrsqrt.pop %v334
  %v336 = vmul.f32 %v335, %v334
  %v337 = vmul.f32 %v336, %v335
  %v338 = vmul.f32 0.5, %v337
  %v339 = vsub.f32 1.5, %v338
  %v340 = vmul.f32 %v335, %v339
  %vm341 = vweird.f32 %v334
  %vm342 = vweird.f32 %v335
  %vm343 = vmor %vm341, %vm342
  %v344 = vsel %vm343, %v335, %v340
  %v345 = vmul.f32 %v344, %v69
  %v346 = vmul.f32 %v261, %v345
  %v348 = vrot.slane %v346, 7
  %v350 = vsub.f32 %v69, %v348
  %v351 = vperm.slane %v345, 0
  %v352 = vmul.f32 %v145, %v351
  %v353 = vmul.f32 %v147, %v351
  %v354 = vmul.f32 %v150, %v351
  %v355 = vmul.f32 %v152, %v351
  %v356 = vmul.f32 %v155, %v351
  %v357 = vmul.f32 %v157, %v351
  %v358 = vmul.f32 %v160, %v351
  %v359 = vmul.f32 %v162, %v351
  %v360 = vmul.f32 %v165, %v351
  %v361 = vmul.f32 %v167, %v351
  %v362 = vmul.f32 %v170, %v351
  %v363 = vmul.f32 %v172, %v351
  %v364 = vmul.f32 %v175, %v351
  %v365 = vmul.f32 %v177, %v351
  %v366 = vmul.f32 %v180, %v351
  %v367 = vmul.f32 %v182, %v351
  %v368 = vmul.f32 %v185, %v351
  %v369 = vmul.f32 %v187, %v351
  %v370 = vmul.f32 %v190, %v351
  %v371 = vmul.f32 %v192, %v351
  %v372 = vmul.f32 %v195, %v351
  %v373 = vmul.f32 %v197, %v351
  %v374 = vmul.f32 %v200, %v351
  %v375 = vmul.f32 %v202, %v351
  %v376 = vmul.f32 %v205, %v351
  %v377 = vmul.f32 %v207, %v351
  %v378 = vmul.f32 %v210, %v351
  %v379 = vmul.f32 %v212, %v351
  %v380 = vmul.f32 %v215, %v351
  %v381 = vmul.f32 %v217, %v351
  %v382 = vmul.f32 %v220, %v351
  %v383 = vmul.f32 %v222, %v351
  %v384 = vperm.slane %v350, 1
  %v385 = vadd.f32 %v352, %v384
  %v386 = vadd.f32 %v353, %v384
  %v387 = vadd.f32 %v354, %v384
  %v388 = vadd.f32 %v355, %v384
  %v389 = vadd.f32 %v356, %v384
  %v390 = vadd.f32 %v357, %v384
  %v391 = vadd.f32 %v358, %v384
  %v392 = vadd.f32 %v359, %v384
  %v393 = vadd.f32 %v360, %v384
  %v394 = vadd.f32 %v361, %v384
  %v395 = vadd.f32 %v362, %v384
  %v396 = vadd.f32 %v363, %v384
  %v397 = vadd.f32 %v364, %v384
  %v398 = vadd.f32 %v365, %v384
  %v399 = vadd.f32 %v366, %v384
  %v400 = vadd.f32 %v367, %v384
  %v401 = vadd.f32 %v368, %v384
  %v402 = vadd.f32 %v369, %v384
  %v403 = vadd.f32 %v370, %v384
  %v404 = vadd.f32 %v371, %v384
  %v405 = vadd.f32 %v372, %v384
  %v406 = vadd.f32 %v373, %v384
  %v407 = vadd.f32 %v374, %v384
  %v408 = vadd.f32 %v375, %v384
  %v409 = vadd.f32 %v376, %v384
  %v410 = vadd.f32 %v377, %v384
  %v411 = vadd.f32 %v378, %v384
  %v412 = vadd.f32 %v379, %v384
  %v413 = vadd.f32 %v380, %v384
  %v414 = vadd.f32 %v381, %v384
  %v415 = vadd.f32 %v382, %v384
  %v416 = vadd.f32 %v383, %v384
  %v417 = vmax.f32 %v385, 0.0
  %v418 = vmax.f32 %v386, 0.0
  %v419 = vmax.f32 %v387, 0.0
  %v420 = vmax.f32 %v388, 0.0
  %v421 = vmax.f32 %v389, 0.0
  %v422 = vmax.f32 %v390, 0.0
  %v423 = vmax.f32 %v391, 0.0
  %v424 = vmax.f32 %v392, 0.0
  %v425 = vmax.f32 %v393, 0.0
  %v426 = vmax.f32 %v394, 0.0
  %v427 = vmax.f32 %v395, 0.0
  %v428 = vmax.f32 %v396, 0.0
  %v429 = vmax.f32 %v397, 0.0
  %v430 = vmax.f32 %v398, 0.0
  %v431 = vmax.f32 %v399, 0.0
  %v432 = vmax.f32 %v400, 0.0
  %v433 = vmax.f32 %v401, 0.0
  %v434 = vmax.f32 %v402, 0.0
  %v435 = vmax.f32 %v403, 0.0
  %v436 = vmax.f32 %v404, 0.0
  %v437 = vmax.f32 %v405, 0.0
  %v438 = vmax.f32 %v406, 0.0
  %v439 = vmax.f32 %v407, 0.0
  %v440 = vmax.f32 %v408, 0.0
  %v441 = vmax.f32 %v409, 0.0
  %v442 = vmax.f32 %v410, 0.0
  %v443 = vmax.f32 %v411, 0.0
  %v444 = vmax.f32 %v412, 0.0
  %v445 = vmax.f32 %v413, 0.0
  %v446 = vmax.f32 %v414, 0.0
  %v447 = vmax.f32 %v415, 0.0
  %v448 = vmax.f32 %v416, 0.0
  %v449 = vpack.c.bf16 %v418, %v417
  %v450 = vpack.c.bf16 %v420, %v419
  %v451 = vpack.c.bf16 %v422, %v421
  %v452 = vpack.c.bf16 %v424, %v423
  %v453 = vpack.c.bf16 %v426, %v425
  %v454 = vpack.c.bf16 %v428, %v427
  %v455 = vpack.c.bf16 %v430, %v429
  %v456 = vpack.c.bf16 %v432, %v431
  %v457 = vpack.c.bf16 %v434, %v433
  %v458 = vpack.c.bf16 %v436, %v435
  %v459 = vpack.c.bf16 %v438, %v437
  %v460 = vpack.c.bf16 %v440, %v439
  %v461 = vpack.c.bf16 %v442, %v441
  %v462 = vpack.c.bf16 %v444, %v443
  %v463 = vpack.c.bf16 %v446, %v445
  %v464 = vpack.c.bf16 %v448, %v447
  %v465 = vld [vmem:[%s2] sm:$0xf]
  %v466 = vld [vmem:[%s2 + $0x4] sm:$0xf]
  %v467 = vld [vmem:[%s2 + $0x8] sm:$0xf]
  %v468 = vld [vmem:[%s2 + $0xc] sm:$0xf]
  %v469 = vld [vmem:[%s2 + $0x10] sm:$0xf]
  %v470 = vld [vmem:[%s2 + $0x14] sm:$0xf]
  %v471 = vld [vmem:[%s2 + $0x18] sm:$0xf]
  %v472 = vld [vmem:[%s2 + $0x1c] sm:$0xf]
  %v473 = vld [vmem:[%s2 + $0x20] sm:$0xf]
  %v474 = vld [vmem:[%s2 + $0x24] sm:$0xf]
  %v475 = vld [vmem:[%s2 + $0x28] sm:$0xf]
  %v476 = vld [vmem:[%s2 + $0x2c] sm:$0xf]
  %v477 = vld [vmem:[%s2 + $0x30] sm:$0xf]
  %v478 = vld [vmem:[%s2 + $0x34] sm:$0xf]
  %v479 = vld [vmem:[%s2 + $0x38] sm:$0xf]
  %v480 = vld [vmem:[%s2 + $0x3c] sm:$0xf]
  %v497 = vunpack.c.l.b16 %v465
  %v498 = vunpack.c.l.b16 %v466
  %v499 = vunpack.c.l.b16 %v467
  %v500 = vunpack.c.l.b16 %v468
  %v501 = vunpack.c.l.b16 %v469
  %v502 = vunpack.c.l.b16 %v470
  %v503 = vunpack.c.l.b16 %v471
  %v504 = vunpack.c.l.b16 %v472
  %v505 = vunpack.c.l.b16 %v473
  %v506 = vunpack.c.l.b16 %v474
  %v507 = vunpack.c.l.b16 %v475
  %v508 = vunpack.c.l.b16 %v476
  %v509 = vunpack.c.l.b16 %v477
  %v510 = vunpack.c.l.b16 %v478
  %v511 = vunpack.c.l.b16 %v479
  %v512 = vunpack.c.l.b16 %v480
  %v513 = vpack.c.b16 %v498, %v497
  %v514 = vpack.c.b16 %v500, %v499
  %v515 = vpack.c.b16 %v502, %v501
  %v516 = vpack.c.b16 %v504, %v503
  %v517 = vpack.c.b16 %v506, %v505
  %v518 = vpack.c.b16 %v508, %v507
  %v519 = vpack.c.b16 %v510, %v509
  %v520 = vpack.c.b16 %v512, %v511
  %529 = vmatpush.bf16.msra.mxu0 %v520
  %530 = vmatpush.bf16.msra.mxu0 %v519
  %531 = vmatpush.bf16.msra.mxu0 %v518
  %532 = vmatpush.bf16.msra.mxu0 %v517
  %533 = vmatpush.bf16.msra.mxu0 %v516
  %534 = vmatpush.bf16.msra.mxu0 %v515
  %535 = vmatpush.bf16.msra.mxu0 %v514
  %536 = vmatpush.bf16.msra.mxu0 %v513
  %537 = vmatmul.bf16.gmra.mxu0 %v449
  %v538 = vpop.f32.mrf.mxu0
  %v539 = vadd.f32 0.0, %v538
  %v540 = vpop.f32.mrf.mxu0
  %v541 = vadd.f32 0.0, %v540
  %542 = vmatmul.bf16.gmra.mxu0 %v450
  %v543 = vpop.f32.mrf.mxu0
  %v544 = vadd.f32 0.0, %v543
  %v545 = vpop.f32.mrf.mxu0
  %v546 = vadd.f32 0.0, %v545
  %547 = vmatmul.bf16.gmra.mxu0 %v451
  %v548 = vpop.f32.mrf.mxu0
  %v549 = vadd.f32 0.0, %v548
  %v550 = vpop.f32.mrf.mxu0
  %v551 = vadd.f32 0.0, %v550
  %552 = vmatmul.bf16.gmra.mxu0 %v452
  %v553 = vpop.f32.mrf.mxu0
  %v554 = vadd.f32 0.0, %v553
  %v555 = vpop.f32.mrf.mxu0
  %v556 = vadd.f32 0.0, %v555
  %557 = vmatmul.bf16.gmra.mxu0 %v453
  %v558 = vpop.f32.mrf.mxu0
  %v559 = vadd.f32 0.0, %v558
  %v560 = vpop.f32.mrf.mxu0
  %v561 = vadd.f32 0.0, %v560
  %562 = vmatmul.bf16.gmra.mxu0 %v454
  %v563 = vpop.f32.mrf.mxu0
  %v564 = vadd.f32 0.0, %v563
  %v565 = vpop.f32.mrf.mxu0
  %v566 = vadd.f32 0.0, %v565
  %567 = vmatmul.bf16.gmra.mxu0 %v455
  %v568 = vpop.f32.mrf.mxu0
  %v569 = vadd.f32 0.0, %v568
  %v570 = vpop.f32.mrf.mxu0
  %v571 = vadd.f32 0.0, %v570
  %572 = vmatmul.bf16.gmra.mxu0 %v456
  %v573 = vpop.f32.mrf.mxu0
  %v574 = vadd.f32 0.0, %v573
  %v575 = vpop.f32.mrf.mxu0
  %v576 = vadd.f32 0.0, %v575
  %577 = vmatmul.bf16.gmra.mxu0 %v457
  %v578 = vpop.f32.mrf.mxu0
  %v579 = vadd.f32 0.0, %v578
  %v580 = vpop.f32.mrf.mxu0
  %v581 = vadd.f32 0.0, %v580
  %582 = vmatmul.bf16.gmra.mxu0 %v458
  %v583 = vpop.f32.mrf.mxu0
  %v584 = vadd.f32 0.0, %v583
  %v585 = vpop.f32.mrf.mxu0
  %v586 = vadd.f32 0.0, %v585
  %587 = vmatmul.bf16.gmra.mxu0 %v459
  %v588 = vpop.f32.mrf.mxu0
  %v589 = vadd.f32 0.0, %v588
  %v590 = vpop.f32.mrf.mxu0
  %v591 = vadd.f32 0.0, %v590
  %592 = vmatmul.bf16.gmra.mxu0 %v460
  %v593 = vpop.f32.mrf.mxu0
  %v594 = vadd.f32 0.0, %v593
  %v595 = vpop.f32.mrf.mxu0
  %v596 = vadd.f32 0.0, %v595
  %597 = vmatmul.bf16.gmra.mxu0 %v461
  %v598 = vpop.f32.mrf.mxu0
  %v599 = vadd.f32 0.0, %v598
  %v600 = vpop.f32.mrf.mxu0
  %v601 = vadd.f32 0.0, %v600
  %602 = vmatmul.bf16.gmra.mxu0 %v462
  %v603 = vpop.f32.mrf.mxu0
  %v604 = vadd.f32 0.0, %v603
  %v605 = vpop.f32.mrf.mxu0
  %v606 = vadd.f32 0.0, %v605
  %607 = vmatmul.bf16.gmra.mxu0 %v463
  %v608 = vpop.f32.mrf.mxu0
  %v609 = vadd.f32 0.0, %v608
  %v610 = vpop.f32.mrf.mxu0
  %v611 = vadd.f32 0.0, %v610
  %612 = vmatmul.bf16.gmra.mxu0 %v464
  %v613 = vpop.f32.mrf.mxu0
  %v614 = vadd.f32 0.0, %v613
  %v615 = vpop.f32.mrf.mxu0
  %v616 = vadd.f32 0.0, %v615
  %617 = vdwg.mxu0
  %v618 = vadd.f32 %v539, %v541
  %v619 = vadd.f32 %v618, %v544
  %v620 = vadd.f32 %v619, %v546
  %v621 = vadd.f32 %v620, %v549
  %v622 = vadd.f32 %v621, %v551
  %v623 = vadd.f32 %v622, %v554
  %v624 = vadd.f32 %v623, %v556
  %v625 = vadd.f32 %v624, %v559
  %v626 = vadd.f32 %v625, %v561
  %v627 = vadd.f32 %v626, %v564
  %v628 = vadd.f32 %v627, %v566
  %v629 = vadd.f32 %v628, %v569
  %v630 = vadd.f32 %v629, %v571
  %v631 = vadd.f32 %v630, %v574
  %v632 = vadd.f32 %v631, %v576
  %v633 = vadd.f32 %v632, %v579
  %v634 = vadd.f32 %v633, %v581
  %v635 = vadd.f32 %v634, %v584
  %v636 = vadd.f32 %v635, %v586
  %v637 = vadd.f32 %v636, %v589
  %v638 = vadd.f32 %v637, %v591
  %v639 = vadd.f32 %v638, %v594
  %v640 = vadd.f32 %v639, %v596
  %v641 = vadd.f32 %v640, %v599
  %v642 = vadd.f32 %v641, %v601
  %v643 = vadd.f32 %v642, %v604
  %v644 = vadd.f32 %v643, %v606
  %v645 = vadd.f32 %v644, %v609
  %v646 = vadd.f32 %v645, %v611
  %v647 = vadd.f32 %v646, %v614
  %v648 = vadd.f32 %v647, %v616
  %v649 = vrot.slane %v648, 4
  %v650 = vadd.f32 %v648, %v649
  %v651 = vrot.slane %v650, 2
  %v652 = vadd.f32 %v650, %v651
  %v653 = vrot.slane %v652, 1
  %v654 = vadd.f32 %v652, %v653
  %v655 = vmul.f32 %v654, 0.00390625
  %v656 = vmul.f32 %v539, %v539
  %v657 = vmul.f32 %v541, %v541
  %v658 = vmul.f32 %v544, %v544
  %v659 = vmul.f32 %v546, %v546
  %v660 = vmul.f32 %v549, %v549
  %v661 = vmul.f32 %v551, %v551
  %v662 = vmul.f32 %v554, %v554
  %v663 = vmul.f32 %v556, %v556
  %v664 = vmul.f32 %v559, %v559
  %v665 = vmul.f32 %v561, %v561
  %v666 = vmul.f32 %v564, %v564
  %v667 = vmul.f32 %v566, %v566
  %v668 = vmul.f32 %v569, %v569
  %v669 = vmul.f32 %v571, %v571
  %v670 = vmul.f32 %v574, %v574
  %v671 = vmul.f32 %v576, %v576
  %v672 = vmul.f32 %v579, %v579
  %v673 = vmul.f32 %v581, %v581
  %v674 = vmul.f32 %v584, %v584
  %v675 = vmul.f32 %v586, %v586
  %v676 = vmul.f32 %v589, %v589
  %v677 = vmul.f32 %v591, %v591
  %v678 = vmul.f32 %v594, %v594
  %v679 = vmul.f32 %v596, %v596
  %v680 = vmul.f32 %v599, %v599
  %v681 = vmul.f32 %v601, %v601
  %v682 = vmul.f32 %v604, %v604
  %v683 = vmul.f32 %v606, %v606
  %v684 = vmul.f32 %v609, %v609
  %v685 = vmul.f32 %v611, %v611
  %v686 = vmul.f32 %v614, %v614
  %v687 = vmul.f32 %v616, %v616
  %v688 = vadd.f32 %v656, %v657
  %v689 = vadd.f32 %v688, %v658
  %v690 = vadd.f32 %v689, %v659
  %v691 = vadd.f32 %v690, %v660
  %v692 = vadd.f32 %v691, %v661
  %v693 = vadd.f32 %v692, %v662
  %v694 = vadd.f32 %v693, %v663
  %v695 = vadd.f32 %v694, %v664
  %v696 = vadd.f32 %v695, %v665
  %v697 = vadd.f32 %v696, %v666
  %v698 = vadd.f32 %v697, %v667
  %v699 = vadd.f32 %v698, %v668
  %v700 = vadd.f32 %v699, %v669
  %v701 = vadd.f32 %v700, %v670
  %v702 = vadd.f32 %v701, %v671
  %v703 = vadd.f32 %v702, %v672
  %v704 = vadd.f32 %v703, %v673
  %v705 = vadd.f32 %v704, %v674
  %v706 = vadd.f32 %v705, %v675
  %v707 = vadd.f32 %v706, %v676
  %v708 = vadd.f32 %v707, %v677
  %v709 = vadd.f32 %v708, %v678
  %v710 = vadd.f32 %v709, %v679
  %v711 = vadd.f32 %v710, %v680
  %v712 = vadd.f32 %v711, %v681
  %v713 = vadd.f32 %v712, %v682
  %v714 = vadd.f32 %v713, %v683
  %v715 = vadd.f32 %v714, %v684
  %v716 = vadd.f32 %v715, %v685
  %v717 = vadd.f32 %v716, %v686
  %v718 = vadd.f32 %v717, %v687
  %v719 = vrot.slane %v718, 4
  %v720 = vadd.f32 %v718, %v719
  %v721 = vrot.slane %v720, 2
  %v722 = vadd.f32 %v720, %v721
  %v723 = vrot.slane %v722, 1
  %v724 = vadd.f32 %v722, %v723
  %v725 = vmul.f32 %v724, 0.00390625
  %v726 = vmul.f32 %v655, %v655
  %v727 = vsub.f32 %v725, %v726
  %v728 = vadd.f32 %v727, 1e-05
  %v729 = vrsqrt.pop %v728
  %v730 = vmul.f32 %v729, %v728
  %v731 = vmul.f32 %v730, %v729
  %v732 = vmul.f32 0.5, %v731
  %v733 = vsub.f32 1.5, %v732
  %v734 = vmul.f32 %v729, %v733
  %vm735 = vweird.f32 %v728
  %vm736 = vweird.f32 %v729
  %vm737 = vmor %vm735, %vm736
  %v738 = vsel %vm737, %v729, %v734
  %v739 = vmul.f32 %v738, %v69
  %v740 = vmul.f32 %v655, %v739
  %v742 = vrot.slane %v740, 7
  %v744 = vsub.f32 %v69, %v742
  %v745 = vperm.slane %v739, 2
  %v746 = vmul.f32 %v539, %v745
  %v747 = vmul.f32 %v541, %v745
  %v748 = vmul.f32 %v544, %v745
  %v749 = vmul.f32 %v546, %v745
  %v750 = vmul.f32 %v549, %v745
  %v751 = vmul.f32 %v551, %v745
  %v752 = vmul.f32 %v554, %v745
  %v753 = vmul.f32 %v556, %v745
  %v754 = vmul.f32 %v559, %v745
  %v755 = vmul.f32 %v561, %v745
  %v756 = vmul.f32 %v564, %v745
  %v757 = vmul.f32 %v566, %v745
  %v758 = vmul.f32 %v569, %v745
  %v759 = vmul.f32 %v571, %v745
  %v760 = vmul.f32 %v574, %v745
  %v761 = vmul.f32 %v576, %v745
  %v762 = vmul.f32 %v579, %v745
  %v763 = vmul.f32 %v581, %v745
  %v764 = vmul.f32 %v584, %v745
  %v765 = vmul.f32 %v586, %v745
  %v766 = vmul.f32 %v589, %v745
  %v767 = vmul.f32 %v591, %v745
  %v768 = vmul.f32 %v594, %v745
  %v769 = vmul.f32 %v596, %v745
  %v770 = vmul.f32 %v599, %v745
  %v771 = vmul.f32 %v601, %v745
  %v772 = vmul.f32 %v604, %v745
  %v773 = vmul.f32 %v606, %v745
  %v774 = vmul.f32 %v609, %v745
  %v775 = vmul.f32 %v611, %v745
  %v776 = vmul.f32 %v614, %v745
  %v777 = vmul.f32 %v616, %v745
  %v778 = vperm.slane %v744, 3
  %v779 = vadd.f32 %v746, %v778
  %v780 = vadd.f32 %v747, %v778
  %v781 = vadd.f32 %v748, %v778
  %v782 = vadd.f32 %v749, %v778
  %v783 = vadd.f32 %v750, %v778
  %v784 = vadd.f32 %v751, %v778
  %v785 = vadd.f32 %v752, %v778
  %v786 = vadd.f32 %v753, %v778
  %v787 = vadd.f32 %v754, %v778
  %v788 = vadd.f32 %v755, %v778
  %v789 = vadd.f32 %v756, %v778
  %v790 = vadd.f32 %v757, %v778
  %v791 = vadd.f32 %v758, %v778
  %v792 = vadd.f32 %v759, %v778
  %v793 = vadd.f32 %v760, %v778
  %v794 = vadd.f32 %v761, %v778
  %v795 = vadd.f32 %v762, %v778
  %v796 = vadd.f32 %v763, %v778
  %v797 = vadd.f32 %v764, %v778
  %v798 = vadd.f32 %v765, %v778
  %v799 = vadd.f32 %v766, %v778
  %v800 = vadd.f32 %v767, %v778
  %v801 = vadd.f32 %v768, %v778
  %v802 = vadd.f32 %v769, %v778
  %v803 = vadd.f32 %v770, %v778
  %v804 = vadd.f32 %v771, %v778
  %v805 = vadd.f32 %v772, %v778
  %v806 = vadd.f32 %v773, %v778
  %v807 = vadd.f32 %v774, %v778
  %v808 = vadd.f32 %v775, %v778
  %v809 = vadd.f32 %v776, %v778
  %v810 = vadd.f32 %v777, %v778
  %v811 = vmax.f32 %v779, 0.0
  %v812 = vmax.f32 %v780, 0.0
  %v813 = vmax.f32 %v781, 0.0
  %v814 = vmax.f32 %v782, 0.0
  %v815 = vmax.f32 %v783, 0.0
  %v816 = vmax.f32 %v784, 0.0
  %v817 = vmax.f32 %v785, 0.0
  %v818 = vmax.f32 %v786, 0.0
  %v819 = vmax.f32 %v787, 0.0
  %v820 = vmax.f32 %v788, 0.0
  %v821 = vmax.f32 %v789, 0.0
  %v822 = vmax.f32 %v790, 0.0
  %v823 = vmax.f32 %v791, 0.0
  %v824 = vmax.f32 %v792, 0.0
  %v825 = vmax.f32 %v793, 0.0
  %v826 = vmax.f32 %v794, 0.0
  %v827 = vmax.f32 %v795, 0.0
  %v828 = vmax.f32 %v796, 0.0
  %v829 = vmax.f32 %v797, 0.0
  %v830 = vmax.f32 %v798, 0.0
  %v831 = vmax.f32 %v799, 0.0
  %v832 = vmax.f32 %v800, 0.0
  %v833 = vmax.f32 %v801, 0.0
  %v834 = vmax.f32 %v802, 0.0
  %v835 = vmax.f32 %v803, 0.0
  %v836 = vmax.f32 %v804, 0.0
  %v837 = vmax.f32 %v805, 0.0
  %v838 = vmax.f32 %v806, 0.0
  %v839 = vmax.f32 %v807, 0.0
  %v840 = vmax.f32 %v808, 0.0
  %v841 = vmax.f32 %v809, 0.0
  %v842 = vmax.f32 %v810, 0.0
  %v843 = vpack.c.bf16 %v812, %v811
  %v844 = vpack.c.bf16 %v814, %v813
  %v845 = vpack.c.bf16 %v816, %v815
  %v846 = vpack.c.bf16 %v818, %v817
  %v847 = vpack.c.bf16 %v820, %v819
  %v848 = vpack.c.bf16 %v822, %v821
  %v849 = vpack.c.bf16 %v824, %v823
  %v850 = vpack.c.bf16 %v826, %v825
  %v851 = vpack.c.bf16 %v828, %v827
  %v852 = vpack.c.bf16 %v830, %v829
  %v853 = vpack.c.bf16 %v832, %v831
  %v854 = vpack.c.bf16 %v834, %v833
  %v855 = vpack.c.bf16 %v836, %v835
  %v856 = vpack.c.bf16 %v838, %v837
  %v857 = vpack.c.bf16 %v840, %v839
  %v858 = vpack.c.bf16 %v842, %v841
  %v859 = vld [vmem:[%s3] sm:$0xf]
  %v860 = vld [vmem:[%s3 + $0x4] sm:$0xf]
  %v861 = vld [vmem:[%s3 + $0x8] sm:$0xf]
  %v862 = vld [vmem:[%s3 + $0xc] sm:$0xf]
  %v863 = vld [vmem:[%s3 + $0x10] sm:$0xf]
  %v864 = vld [vmem:[%s3 + $0x14] sm:$0xf]
  %v865 = vld [vmem:[%s3 + $0x18] sm:$0xf]
  %v866 = vld [vmem:[%s3 + $0x1c] sm:$0xf]
  %v867 = vld [vmem:[%s3 + $0x20] sm:$0xf]
  %v868 = vld [vmem:[%s3 + $0x24] sm:$0xf]
  %v869 = vld [vmem:[%s3 + $0x28] sm:$0xf]
  %v870 = vld [vmem:[%s3 + $0x2c] sm:$0xf]
  %v871 = vld [vmem:[%s3 + $0x30] sm:$0xf]
  %v872 = vld [vmem:[%s3 + $0x34] sm:$0xf]
  %v873 = vld [vmem:[%s3 + $0x38] sm:$0xf]
  %v874 = vld [vmem:[%s3 + $0x3c] sm:$0xf]
  %v875 = vperm.slane %v69, 4
  %v892 = vunpack.c.l.b16 %v859
  %v893 = vunpack.c.l.b16 %v860
  %v894 = vunpack.c.l.b16 %v861
  %v895 = vunpack.c.l.b16 %v862
  %v896 = vunpack.c.l.b16 %v863
  %v897 = vunpack.c.l.b16 %v864
  %v898 = vunpack.c.l.b16 %v865
  %v899 = vunpack.c.l.b16 %v866
  %v900 = vunpack.c.l.b16 %v867
  %v901 = vunpack.c.l.b16 %v868
  %v902 = vunpack.c.l.b16 %v869
  %v903 = vunpack.c.l.b16 %v870
  %v904 = vunpack.c.l.b16 %v871
  %v905 = vunpack.c.l.b16 %v872
  %v906 = vunpack.c.l.b16 %v873
  %v907 = vunpack.c.l.b16 %v874
  %v908 = vpack.c.b16 %v893, %v892
  %v909 = vpack.c.b16 %v895, %v894
  %v910 = vpack.c.b16 %v897, %v896
  %v911 = vpack.c.b16 %v899, %v898
  %v912 = vpack.c.b16 %v901, %v900
  %v913 = vpack.c.b16 %v903, %v902
  %v914 = vpack.c.b16 %v905, %v904
  %v915 = vpack.c.b16 %v907, %v906
  %924 = vmatpush.bf16.msra.mxu0 %v915
  %925 = vmatpush.bf16.msra.mxu0 %v914
  %926 = vmatpush.bf16.msra.mxu0 %v913
  %927 = vmatpush.bf16.msra.mxu0 %v912
  %928 = vmatpush.bf16.msra.mxu0 %v911
  %929 = vmatpush.bf16.msra.mxu0 %v910
  %930 = vmatpush.bf16.msra.mxu0 %v909
  %931 = vmatpush.bf16.msra.mxu0 %v908
  %932 = vmatmul.bf16.gmra.mxu0 %v843
  %v933 = vpop.f32.mrf.mxu0
  %v934 = vadd.f32 %v875, %v933
  %v935 = vpop.f32.mrf.mxu0
  %v936 = vadd.f32 %v875, %v935
  %937 = vmatmul.bf16.gmra.mxu0 %v844
  %v938 = vpop.f32.mrf.mxu0
  %v939 = vadd.f32 %v875, %v938
  %v940 = vpop.f32.mrf.mxu0
  %v941 = vadd.f32 %v875, %v940
  %942 = vmatmul.bf16.gmra.mxu0 %v845
  %v943 = vpop.f32.mrf.mxu0
  %v944 = vadd.f32 %v875, %v943
  %v945 = vpop.f32.mrf.mxu0
  %v946 = vadd.f32 %v875, %v945
  %947 = vmatmul.bf16.gmra.mxu0 %v846
  %v948 = vpop.f32.mrf.mxu0
  %v949 = vadd.f32 %v875, %v948
  %v950 = vpop.f32.mrf.mxu0
  %v951 = vadd.f32 %v875, %v950
  %952 = vmatmul.bf16.gmra.mxu0 %v847
  %v953 = vpop.f32.mrf.mxu0
  %v954 = vadd.f32 %v875, %v953
  %v955 = vpop.f32.mrf.mxu0
  %v956 = vadd.f32 %v875, %v955
  %957 = vmatmul.bf16.gmra.mxu0 %v848
  %v958 = vpop.f32.mrf.mxu0
  %v959 = vadd.f32 %v875, %v958
  %v960 = vpop.f32.mrf.mxu0
  %v961 = vadd.f32 %v875, %v960
  %962 = vmatmul.bf16.gmra.mxu0 %v849
  %v963 = vpop.f32.mrf.mxu0
  %v964 = vadd.f32 %v875, %v963
  %v965 = vpop.f32.mrf.mxu0
  %v966 = vadd.f32 %v875, %v965
  %967 = vmatmul.bf16.gmra.mxu0 %v850
  %v968 = vpop.f32.mrf.mxu0
  %v969 = vadd.f32 %v875, %v968
  %v970 = vpop.f32.mrf.mxu0
  %v971 = vadd.f32 %v875, %v970
  %972 = vmatmul.bf16.gmra.mxu0 %v851
  %v973 = vpop.f32.mrf.mxu0
  %v974 = vadd.f32 %v875, %v973
  %v975 = vpop.f32.mrf.mxu0
  %v976 = vadd.f32 %v875, %v975
  %977 = vmatmul.bf16.gmra.mxu0 %v852
  %v978 = vpop.f32.mrf.mxu0
  %v979 = vadd.f32 %v875, %v978
  %v980 = vpop.f32.mrf.mxu0
  %v981 = vadd.f32 %v875, %v980
  %982 = vmatmul.bf16.gmra.mxu0 %v853
  %v983 = vpop.f32.mrf.mxu0
  %v984 = vadd.f32 %v875, %v983
  %v985 = vpop.f32.mrf.mxu0
  %v986 = vadd.f32 %v875, %v985
  %987 = vmatmul.bf16.gmra.mxu0 %v854
  %v988 = vpop.f32.mrf.mxu0
  %v989 = vadd.f32 %v875, %v988
  %v990 = vpop.f32.mrf.mxu0
  %v991 = vadd.f32 %v875, %v990
  %992 = vmatmul.bf16.gmra.mxu0 %v855
  %v993 = vpop.f32.mrf.mxu0
  %v994 = vadd.f32 %v875, %v993
  %v995 = vpop.f32.mrf.mxu0
  %v996 = vadd.f32 %v875, %v995
  %997 = vmatmul.bf16.gmra.mxu0 %v856
  %v998 = vpop.f32.mrf.mxu0
  %v999 = vadd.f32 %v875, %v998
  %v1000 = vpop.f32.mrf.mxu0
  %v1001 = vadd.f32 %v875, %v1000
  %1002 = vmatmul.bf16.gmra.mxu0 %v857
  %v1003 = vpop.f32.mrf.mxu0
  %v1004 = vadd.f32 %v875, %v1003
  %v1005 = vpop.f32.mrf.mxu0
  %v1006 = vadd.f32 %v875, %v1005
  %1007 = vmatmul.bf16.gmra.mxu0 %v858
  %v1008 = vpop.f32.mrf.mxu0
  %v1009 = vadd.f32 %v875, %v1008
  %v1010 = vpop.f32.mrf.mxu0
  %v1011 = vadd.f32 %v875, %v1010
  %1012 = vdwg.mxu0
  %vm1013 = vcmask 130048
  %1014 = vst.msk [vmem:[%s5] sm:$0xff] %vm1013, %v934
  %1015 = vst.msk [vmem:[%s5 + $0x8] sm:$0xff] %vm1013, %v936
  %1016 = vst.msk [vmem:[%s5 + $0x10] sm:$0xff] %vm1013, %v939
  %1017 = vst.msk [vmem:[%s5 + $0x18] sm:$0xff] %vm1013, %v941
  %1018 = vst.msk [vmem:[%s5 + $0x20] sm:$0xff] %vm1013, %v944
  %1019 = vst.msk [vmem:[%s5 + $0x28] sm:$0xff] %vm1013, %v946
  %1020 = vst.msk [vmem:[%s5 + $0x30] sm:$0xff] %vm1013, %v949
  %1021 = vst.msk [vmem:[%s5 + $0x38] sm:$0xff] %vm1013, %v951
  %1022 = vst.msk [vmem:[%s5 + $0x40] sm:$0xff] %vm1013, %v954
  %1023 = vst.msk [vmem:[%s5 + $0x48] sm:$0xff] %vm1013, %v956
  %1024 = vst.msk [vmem:[%s5 + $0x50] sm:$0xff] %vm1013, %v959
  %1025 = vst.msk [vmem:[%s5 + $0x58] sm:$0xff] %vm1013, %v961
  %1026 = vst.msk [vmem:[%s5 + $0x60] sm:$0xff] %vm1013, %v964
  %1027 = vst.msk [vmem:[%s5 + $0x68] sm:$0xff] %vm1013, %v966
  %1028 = vst.msk [vmem:[%s5 + $0x70] sm:$0xff] %vm1013, %v969
  %1029 = vst.msk [vmem:[%s5 + $0x78] sm:$0xff] %vm1013, %v971
  %1030 = vst.msk [vmem:[%s5 + $0x80] sm:$0xff] %vm1013, %v974
  %1031 = vst.msk [vmem:[%s5 + $0x88] sm:$0xff] %vm1013, %v976
  %1032 = vst.msk [vmem:[%s5 + $0x90] sm:$0xff] %vm1013, %v979
  %1033 = vst.msk [vmem:[%s5 + $0x98] sm:$0xff] %vm1013, %v981
  %1034 = vst.msk [vmem:[%s5 + $0xa0] sm:$0xff] %vm1013, %v984
  %1035 = vst.msk [vmem:[%s5 + $0xa8] sm:$0xff] %vm1013, %v986
  %1036 = vst.msk [vmem:[%s5 + $0xb0] sm:$0xff] %vm1013, %v989
  %1037 = vst.msk [vmem:[%s5 + $0xb8] sm:$0xff] %vm1013, %v991
  %1038 = vst.msk [vmem:[%s5 + $0xc0] sm:$0xff] %vm1013, %v994
  %1039 = vst.msk [vmem:[%s5 + $0xc8] sm:$0xff] %vm1013, %v996
  %1040 = vst.msk [vmem:[%s5 + $0xd0] sm:$0xff] %vm1013, %v999
  %1041 = vst.msk [vmem:[%s5 + $0xd8] sm:$0xff] %vm1013, %v1001
  %1042 = vst.msk [vmem:[%s5 + $0xe0] sm:$0xff] %vm1013, %v1004
  %1043 = vst.msk [vmem:[%s5 + $0xe8] sm:$0xff] %vm1013, %v1006
  %1044 = vst.msk [vmem:[%s5 + $0xf0] sm:$0xff] %vm1013, %v1009
  %1045 = vst.msk [vmem:[%s5 + $0xf8] sm:$0xff] %vm1013, %v1011
  // Predicated region
  $region22: #{net_forward.1} parent=0 // pred_check
    _
  $region23: #{net_forward.1} parent=0 // pred_check_branch
    %1047 = sbr.rel (0) target = $region25
  $region24: #{net_forward.1} parent=0 // pred_region
    _
  $region25: #{net_forward.1} parent=0 // pred_fallthru
    _
  // Predicated region
  $region26: #{net_forward.1} parent=0 // pred_check
    _
  $region27: #{net_forward.1} parent=0 // pred_check_branch
    %1049 = sbr.rel (0) target = $region29
  $region28: #{net_forward.1} parent=0 // pred_region
    _
  $region29: #{net_forward.1} parent=0 // pred_fallthru
    _

</llo_original>
